<compile_context>
chip_gen: v6e
topology: v6e:2x2x1
jax: 0.10.0
libtpu: 0.0.40
codegen_flags: <defaults>
</compile_context>

<pallas_src>
import functools

import jax
import jax.numpy as jnp
import numpy as np
from jax import lax
from jax.experimental import pallas as pl
from jax.experimental.pallas import tpu as pltpu


# Leave headroom below v7x's 64 MiB physical VMEM; raises the 16/32 MiB default on
# v5e/v6e so larger tiles are usable.
_VMEM_LIMIT = 48 * 1024 * 1024


def _pick_tile(n, target):
    """Largest multiple-of-8 divisor of n that is <= target (or n itself)."""
    if n <= target:
        return n
    t = (target // 8) * 8
    while t >= 8:
        if n % t == 0:
            return t
        t -= 8
    return n


# ---------------------------------------------------------------------------
# Kernel 1a: per-metapath feature projection  z_m = h @ W_m   (hoisted out of the
# attention kernel so it runs once per meta-path, not once per dst tile).
# ---------------------------------------------------------------------------
def _proj_kernel(h_ref, w_ref, z_ref):
    z_ref[0] = jnp.dot(h_ref[...], w_ref[0], preferred_element_type=jnp.float32)


def gat_project(h, w, tile_n=512):
    n_nodes, din = h.shape
    num_paths, _, feat = w.shape
    tn = _pick_tile(n_nodes, tile_n)
    return pl.pallas_call(
        _proj_kernel,
        out_shape=jax.ShapeDtypeStruct((num_paths, n_nodes, feat), jnp.float32),
        grid_spec=pltpu.PrefetchScalarGridSpec(
            num_scalar_prefetch=0,
            grid=(num_paths, n_nodes // tn),
            in_specs=[
                pl.BlockSpec((tn, din), lambda m, n: (n, 0)),
                pl.BlockSpec((1, din, feat), lambda m, n: (m, 0, 0)),
            ],
            out_specs=pl.BlockSpec((1, tn, feat), lambda m, n: (m, n, 0)),
        ),
        compiler_params=pltpu.CompilerParams(
            dimension_semantics=("parallel", "parallel")),
    )(h, w)


# ---------------------------------------------------------------------------
# Kernel 1b: multi-head GAT attention, dst-axis tiled, int8 adjacency stream.
# Grid = (num_meta_paths, num_dst_tiles); both axes "parallel".
# Precondition: every dst row has >= 1 in-edge (self-loops added by the caller),
# otherwise the edge softmax would divide by zero.
# ---------------------------------------------------------------------------
def _gat_attn_kernel(z_src_ref, z_dst_ref, adj_ref, al_ref, ar_ref, b_ref, out_ref,
                     *, num_heads, head_dim):
    z_src = z_src_ref[0]                                    # (N, F)      f32
    z_dst = z_dst_ref[0]                                    # (T, F)      f32
    mask = adj_ref[0].astype(jnp.int32) > 0                 # (T, N)      from int8 stream
    al = al_ref[0]                                          # (1, F)
    ar = ar_ref[0]                                          # (1, F)
    bias = b_ref[0]                                         # (1, F)

    head_outs = []
    for hd in range(num_heads):
        sl = slice(hd * head_dim, (hd + 1) * head_dim)
        zs = z_src[:, sl]                                   # (N, Dh)
        zd = z_dst[:, sl]                                   # (T, Dh)
        # e[dst, src] = leaky_relu(el[src] + er[dst]); el as a lane-dense row via
        # a trans_b matmul, er as a per-dst column (VPU reduce).
        el_row = lax.dot_general(al[:, sl], zs, (((1,), (1,)), ((), ())),
                                 preferred_element_type=jnp.float32)      # (1, N)
        er_col = jnp.sum(zd * ar[:, sl], axis=1, keepdims=True)           # (T, 1)
        e = er_col + el_row                                               # (T, N)
        e = jnp.where(e > 0.0, e, 0.2 * e)                  # LeakyReLU(0.2), DGL default
        e = jnp.where(mask, e, -1e30)

        # Exact masked edge-softmax over source nodes (lanes) for this dst tile.
        e = e - jnp.max(e, axis=1, keepdims=True)
        p = jnp.where(mask, jnp.exp(e), 0.0)
        alpha = p / jnp.sum(p, axis=1, keepdims=True)

        rst = jnp.dot(alpha, zs, preferred_element_type=jnp.float32) + bias[:, sl]
        # ELU activation.
        head_outs.append(jnp.where(rst > 0.0, rst, jnp.exp(jnp.minimum(rst, 0.0)) - 1.0))

    out_ref[0] = jnp.concatenate(head_outs, axis=1)         # one (T, H*Dh) store


def gat_attention(z, adjs_i8, attn_l, attn_r, bias, num_heads, tile_dst=256):
    num_paths, n_nodes, feat = z.shape
    head_dim = feat // num_heads
    td = _pick_tile(n_nodes, tile_dst)
    kernel = functools.partial(_gat_attn_kernel, num_heads=num_heads, head_dim=head_dim)
    return pl.pallas_call(
        kernel,
        out_shape=jax.ShapeDtypeStruct((num_paths, n_nodes, feat), jnp.float32),
        grid_spec=pltpu.PrefetchScalarGridSpec(
            num_scalar_prefetch=0,
            grid=(num_paths, n_nodes // td),
            in_specs=[
                pl.BlockSpec((1, n_nodes, feat), lambda m, d: (m, 0, 0)),  # z, all src rows
                pl.BlockSpec((1, td, feat), lambda m, d: (m, d, 0)),       # z, dst rows
                pl.BlockSpec((1, td, n_nodes), lambda m, d: (m, d, 0)),    # int8 adjacency tile
                pl.BlockSpec((1, 1, feat), lambda m, d: (m, 0, 0)),
                pl.BlockSpec((1, 1, feat), lambda m, d: (m, 0, 0)),
                pl.BlockSpec((1, 1, feat), lambda m, d: (m, 0, 0)),
            ],
            out_specs=pl.BlockSpec((1, td, feat), lambda m, d: (m, d, 0)),
        ),
        compiler_params=pltpu.CompilerParams(
            dimension_semantics=("parallel", "parallel"),
            vmem_limit_bytes=_VMEM_LIMIT),
    )(z, z, adjs_i8, attn_l, attn_r, bias)


# ---------------------------------------------------------------------------
# Kernel 2: semantic attention across meta-paths; grid over large node tiles.
# Per-metapath projections fused into one MXU matmul with M_dim = num_paths*TILE_N.
# ---------------------------------------------------------------------------
def _semantic_kernel(z_ref, w1_ref, b1_ref, w2_ref, out_ref, *, num_paths, tile_n):
    feat = z_ref.shape[2]
    z = z_ref[...]                                          # (M, T, F)
    z2 = z.reshape(num_paths * tile_n, feat)                # free: collapse leading dims
    t = jnp.tanh(jnp.dot(z2, w1_ref[...], preferred_element_type=jnp.float32)
                 + b1_ref[...])                             # (M*T, hid)
    # Linear(hid, 1, bias=False) as a VPU multiply + lane reduction.
    s_all = jnp.sum(t * w2_ref[...], axis=1, keepdims=True)  # (M*T, 1)

    # Per-node softmax over meta-paths (matches the given PyTorch SemanticAttention,
    # which softmaxes over dim=1 of the (N, M, 1) scores with no node-mean).
    scores = [s_all[m * tile_n:(m + 1) * tile_n] for m in range(num_paths)]
    s_max = scores[0]
    for m in range(1, num_paths):
        s_max = jnp.maximum(s_max, scores[m])
    ps = [jnp.exp(s - s_max) for s in scores]
    denom = ps[0]
    for m in range(1, num_paths):
        denom = denom + ps[m]
    inv = 1.0 / denom

    acc = (ps[0] * inv) * z[0]
    for m in range(1, num_paths):
        acc = acc + (ps[m] * inv) * z[m]
    out_ref[...] = acc                                      # (T, F)


def semantic_attention(z, w1, b1, w2, tile_n=512):
    num_paths, n_nodes, feat = z.shape
    hid = w1.shape[1]
    tn = _pick_tile(n_nodes, tile_n)
    kernel = functools.partial(_semantic_kernel, num_paths=num_paths, tile_n=tn)
    return pl.pallas_call(
        kernel,
        out_shape=jax.ShapeDtypeStruct((n_nodes, feat), jnp.float32),
        grid_spec=pltpu.PrefetchScalarGridSpec(
            num_scalar_prefetch=0,
            grid=(n_nodes // tn,),
            in_specs=[
                pl.BlockSpec((num_paths, tn, feat), lambda n: (0, n, 0)),
                pl.BlockSpec((feat, hid), lambda n: (0, 0)),
                pl.BlockSpec((1, hid), lambda n: (0, 0)),
                pl.BlockSpec((1, hid), lambda n: (0, 0)),
            ],
            out_specs=pl.BlockSpec((tn, feat), lambda n: (n, 0)),
        ),
        compiler_params=pltpu.CompilerParams(
            dimension_semantics=("parallel",),
            vmem_limit_bytes=_VMEM_LIMIT),
    )(z, w1, b1, w2)


# ---------------------------------------------------------------------------
# Kernel 3: prediction.  Feature table is VMEM-resident (DMA'd once; index map is
# constant across the grid), user/item rows gathered with a one-hot MXU matmul per
# 128-row batch tile, result stored lane-dense as (1, 1, tile_b).
# ---------------------------------------------------------------------------
def _predict_kernel(uidx_ref, iidx_ref, feat_ref, out_ref):
    feat = feat_ref[...]                                    # (N, F)
    n_nodes = feat.shape[0]
    uid = uidx_ref[...]                                     # (tile_b, 1) int32
    iid = iidx_ref[...]                                     # (tile_b, 1) int32
    tile_b = uid.shape[0]

    col = lax.broadcasted_iota(jnp.int32, (tile_b, n_nodes), 1)
    u_rows = jnp.dot((col == uid).astype(jnp.float32), feat,
                     preferred_element_type=jnp.float32)    # (tile_b, F)
    i_rows = jnp.dot((col == iid).astype(jnp.float32), feat,
                     preferred_element_type=jnp.float32)    # (tile_b, F)

    prod = u_rows * i_rows
    ones = jnp.ones((1, prod.shape[1]), jnp.float32)
    # Lane reduction via trans_b matmul -> directly lane-dense (1, tile_b).
    out_ref[0] = lax.dot_general(ones, prod, (((1,), (1,)), ((), ())),
                                 preferred_element_type=jnp.float32)


def predict(features, user_idx, item_idx_shifted, tile_b=128):
    n_nodes, feat = features.shape
    b = user_idx.shape[0]
    num_tiles = pl.cdiv(b, tile_b)
    b_pad = num_tiles * tile_b
    # Padded tail indices point at row 0; harmless since the output is sliced below.
    uidx = jnp.zeros((b_pad, 1), jnp.int32).at[:b, 0].set(user_idx.astype(jnp.int32))
    iidx = jnp.zeros((b_pad, 1), jnp.int32).at[:b, 0].set(item_idx_shifted.astype(jnp.int32))

    out = pl.pallas_call(
        _predict_kernel,
        out_shape=jax.ShapeDtypeStruct((num_tiles, 1, tile_b), jnp.float32),
        grid_spec=pltpu.PrefetchScalarGridSpec(
            num_scalar_prefetch=0,
            grid=(num_tiles,),
            in_specs=[
                pl.BlockSpec((tile_b, 1), lambda t: (t, 0)),
                pl.BlockSpec((tile_b, 1), lambda t: (t, 0)),
                pl.BlockSpec((n_nodes, feat), lambda t: (0, 0)),
            ],
            out_specs=pl.BlockSpec((1, 1, tile_b), lambda t: (t, 0, 0)),
        ),
        compiler_params=pltpu.CompilerParams(dimension_semantics=("parallel",)),
    )(uidx, iidx, features)
    return out.reshape(b_pad)[:b]


# ---------------------------------------------------------------------------
# Full HAN forward (Pallas) and a pure-JAX reference.
# ---------------------------------------------------------------------------
def han_forward(params, adjs_i8, user_idx, item_idx, num_users,
                tile_dst=256, tile_n=512, tile_b=128):
    features = jnp.concatenate([params["uEmbd"], params["iEmbd"]], axis=0)
    for lp in params["layers"]:
        z = gat_project(features, lp["W"], tile_n=tile_n)
        g = gat_attention(z, adjs_i8, lp["attn_l"], lp["attn_r"], lp["bias"],
                          lp["num_heads"], tile_dst=tile_dst)
        features = semantic_attention(g, lp["sem_W1"], lp["sem_b1"], lp["sem_w2"],
                                      tile_n=tile_n)
    return predict(features, user_idx, item_idx + num_users, tile_b=tile_b)


_HI = jax.lax.Precision.HIGHEST


def _gat_ref(h, adj, w, al, ar, bias, num_heads, head_dim):
    z = jnp.dot(h, w, precision=_HI)
    mask = adj != 0
    outs = []
    for hd in range(num_heads):
        sl = slice(hd * head_dim, (hd + 1) * head_dim)
        z_h = z[:, sl]
        el = jnp.sum(z_h * al[:, sl], axis=1, keepdims=True)
        er = jnp.sum(z_h * ar[:, sl], axis=1, keepdims=True)
        e = er + el.T
        e = jnp.where(e > 0.0, e, 0.2 * e)
        e = jnp.where(mask, e, -1e30)
        e = e - jnp.max(e, axis=1, keepdims=True)
        p = jnp.where(mask, jnp.exp(e), 0.0)
        alpha = p / jnp.sum(p, axis=1, keepdims=True)
        rst = jnp.dot(alpha, z_h, precision=_HI) + bias[:, sl]
        outs.append(jnp.where(rst > 0.0, rst, jnp.exp(jnp.minimum(rst, 0.0)) - 1.0))
    return jnp.concatenate(outs, axis=1)


def han_reference(params, adjs, user_idx, item_idx, num_users):
    feats = jnp.concatenate([params["uEmbd"], params["iEmbd"]], axis=0)
    for lp in params["layers"]:
        num_heads = lp["num_heads"]
        head_dim = lp["W"].shape[2] // num_heads
        sem_embs = [
            _gat_ref(feats, adjs[m], lp["W"][m], lp["attn_l"][m], lp["attn_r"][m],
                     lp["bias"][m], num_heads, head_dim)
            for m in range(adjs.shape[0])
        ]
        z = jnp.stack(sem_embs, axis=0)                               # (M, N, F)
        t = jnp.tanh(jnp.einsum("mnf,fh->mnh", z, lp["sem_W1"], precision=_HI)
                     + lp["sem_b1"])
        s = jnp.sum(t * lp["sem_w2"], axis=-1)                        # (M, N)
        s = s - jnp.max(s, axis=0, keepdims=True)
        p = jnp.exp(s)
        beta = p / jnp.sum(p, axis=0, keepdims=True)
        feats = jnp.sum(beta[:, :, None] * z, axis=0)                 # (N, F)
    u = feats[user_idx]
    i = feats[item_idx + num_users]
    return jnp.sum(u * i, axis=1)


def init_params(key, cfg):
    num_users, num_items = cfg["num_users"], cfg["num_items"]
    embed_dim, hidden = cfg["embed_dim"], cfg["hidden_dim"]
    heads, num_paths, sem_hid = cfg["num_heads"], cfg["num_meta_paths"], cfg["sem_hidden"]

    def xavier(k, shape, fan_in, fan_out):
        return jnp.sqrt(2.0 / (fan_in + fan_out)) * jax.random.normal(k, shape, jnp.float32)

    keys = jax.random.split(key, 2 + 7 * len(heads))
    params = {
        "uEmbd": xavier(keys[0], (num_users, embed_dim), num_users, embed_dim),
        "iEmbd": xavier(keys[1], (num_items, embed_dim), num_items, embed_dim),
        "layers": [],
    }
    in_size = embed_dim
    ki = 2
    for h in heads:
        feat = hidden * h
        k = keys[ki:ki + 7]
        ki += 7
        params["layers"].append({
            "num_heads": h,
            "W": xavier(k[0], (num_paths, in_size, feat), in_size, feat),
            "attn_l": 0.1 * jax.random.normal(k[1], (num_paths, 1, feat), jnp.float32),
            "attn_r": 0.1 * jax.random.normal(k[2], (num_paths, 1, feat), jnp.float32),
            "bias": 0.1 * jax.random.normal(k[3], (num_paths, 1, feat), jnp.float32),
            "sem_W1": xavier(k[4], (feat, sem_hid), feat, sem_hid),
            "sem_b1": 0.1 * jax.random.normal(k[5], (1, sem_hid), jnp.float32),
            "sem_w2": xavier(k[6], (1, sem_hid), sem_hid, 1),
        })
        in_size = feat
    return params


if __name__ == "__main__":
    cfg = {
        "num_users": 64,
        "num_items": 64,
        "embed_dim": 32,
        "hidden_dim": 16,
        "num_heads": [2, 2],
        "num_meta_paths": 3,
        "sem_hidden": 128,
        "dropout": 0.0,     # inference: dropout is identity
    }
    batch = 200
    n_nodes = cfg["num_users"] + cfg["num_items"]

    key = jax.random.PRNGKey(0)
    kp, ka, ku, ki = jax.random.split(key, 4)
    params = init_params(kp, cfg)

    # Dense {0,1} int8 adjacency per meta-path (adj[m, dst, src]) with self-loops so
    # every dst row has at least one in-edge (precondition for the edge softmax).
    adjs = (jax.random.uniform(ka, (cfg["num_meta_paths"], n_nodes, n_nodes)) < 0.25)
    adjs = jnp.maximum(adjs.astype(jnp.int8), jnp.eye(n_nodes, dtype=jnp.int8)[None])
    assert bool(jnp.all(jnp.sum(adjs.astype(jnp.int32), axis=2) > 0))

    user_idx = jax.random.randint(ku, (batch,), 0, cfg["num_users"], dtype=jnp.int32)
    item_idx = jax.random.randint(ki, (batch,), 0, cfg["num_items"], dtype=jnp.int32)

    # Small tile sizes here so the demo exercises multi-tile grids; the production
    # defaults (tile_dst=256, tile_n=512, tile_b=128) are sized for the VMEM budget.
    logits = han_forward(params, adjs, user_idx, item_idx, cfg["num_users"],
                         tile_dst=64, tile_n=64, tile_b=128)
    jax.block_until_ready(logits)

    ref = han_reference(params, adjs, user_idx, item_idx, cfg["num_users"])
    np.testing.assert_allclose(np.asarray(logits), np.asarray(ref), rtol=5e-3, atol=5e-3)

    print("KERNEL_OK")
</pallas_src>

<mosaic_0001>
module attributes {stable_mosaic.version = 11 : i64} {
  func.func @_proj_kernel(%arg0: i32, %arg1: i32, %arg2: memref<64x32xf32, #tpu.memory_space<vmem>>, %arg3: memref<1x32x32xf32, #tpu.memory_space<vmem>>, %arg4: memref<1x64x32xf32, #tpu.memory_space<vmem>>) attributes {dimension_semantics = [#tpu.dimension_semantics<parallel>, #tpu.dimension_semantics<parallel>], iteration_bounds = array<i64: 3, 2>, scalar_prefetch = 0 : i64, scratch_operands = 0 : i64, tpu.core_type = #tpu.core_type<tc>, window_params = [{transform_indices = @transform_0, window_bounds = array<i64: 64, 32>}, {transform_indices = @transform_1, window_bounds = array<i64: 1, 32, 32>}, {transform_indices = @transform_2, window_bounds = array<i64: 1, 64, 32>}]} {
    %c0 = arith.constant 0 : index
    %c0_0 = arith.constant 0 : index
    %0 = vector.load %arg2[%c0, %c0_0] : memref<64x32xf32, #tpu.memory_space<vmem>>, vector<64x32xf32>
    %c0_1 = arith.constant 0 : index
    %c0_2 = arith.constant 0 : index
    %c0_3 = arith.constant 0 : index
    %1 = vector.load %arg3[%c0_1, %c0_2, %c0_3] : memref<1x32x32xf32, #tpu.memory_space<vmem>>, vector<1x32x32xf32>
    %2 = vector.shape_cast %1 : vector<1x32x32xf32> to vector<32x32xf32>
    %cst = arith.constant dense<0.000000e+00> : vector<64x32xf32>
    %3 = tpu.matmul %0, %2, %cst {dimension_numbers = #tpu.dot_dimension_numbers<[1], [0], [0], [1], [0, 0, 1, 1], [], []>} : vector<64x32xf32>, vector<32x32xf32>, vector<64x32xf32> -> vector<64x32xf32>
    %c0_4 = arith.constant 0 : index
    %c0_5 = arith.constant 0 : index
    %c0_6 = arith.constant 0 : index
    %4 = vector.load %arg4[%c0_4, %c0_5, %c0_6] : memref<1x64x32xf32, #tpu.memory_space<vmem>>, vector<1x64x32xf32>
    %5 = vector.shape_cast %4 : vector<1x64x32xf32> to vector<64x32xf32>
    %6 = vector.shape_cast %3 : vector<64x32xf32> to vector<1x64x32xf32>
    tpu.vector_store %arg4[%c0_4, %c0_5, %c0_6], %6 {strides = array<i32>} : memref<1x64x32xf32, #tpu.memory_space<vmem>>, vector<1x64x32xf32>,
    return
  }
  func.func @transform_0(%arg0: i32, %arg1: i32) -> (i32, i32) {
    %c0_i32 = arith.constant 0 : i32
    %c0_i32_0 = arith.constant 0 : i32
    return %arg1, %c0_i32 : i32, i32
  }
  func.func @transform_1(%arg0: i32, %arg1: i32) -> (i32, i32, i32) {
    %c0_i32 = arith.constant 0 : i32
    %c0_i32_0 = arith.constant 0 : i32
    %c0_i32_1 = arith.constant 0 : i32
    return %arg0, %c0_i32, %c0_i32_0 : i32, i32, i32
  }
  func.func @transform_2(%arg0: i32, %arg1: i32) -> (i32, i32, i32) {
    %c0_i32 = arith.constant 0 : i32
    %c0_i32_0 = arith.constant 0 : i32
    return %arg0, %arg1, %c0_i32 : i32, i32, i32
  }
}

</mosaic_0001>

<llo_original>
// kernel: tpu_custom_call.1
$region0: #{tpu_custom_call.1}
  #allocation0 [shape = 'u32[]', space=smem, size = 0x4, offset = 0x4, fixed_abs, tag = 'smem constant byte address 0x4 - core index']
  #allocation1 [shape = 'u32[144,128]{1,0:T(1,128)}', space=vmem, size = 0x12000, scoped, tag = 'internal scratch']
  %s0 = inlined_call_operand.vmem [shape: f32[128,32], index: 0, kind: input, shape index: {}]
  %s1 = inlined_call_operand.vmem [shape: f32[3,32,32], index: 1, kind: input, shape index: {}]
  %s2 = inlined_call_operand.vmem [shape: f32[3,128,32], index: 2, kind: output, shape index: {}]
  %s3 = sld [smem:[#allocation0]]
  $region41: #{tpu_custom_call.1} parent=0
    _
  %s5 = ssub.s32 1, %s3
  %s6 = scalar_select 0, %s5, %s3
  loop: start=0, step=1, limit=8
  $region2: #{tpu_custom_call.1} parent=0 // loop_pre_header
    _
  $region3: #{tpu_custom_call.1} parent=0 // loop_header
    %s8 = sphi 0, %s12
    %p9 = scmp.ge.s32.totalorder %s8, 8
    %s15 = sphi 0, %s27
    %s16 = sphi 0, %s23
    %s17 = sphi 0, %s15
    %s18 = sphi 0, %s16
    %s19 = sphi 0, %s17
    %s20 = sphi 0, %s18
    %s30 = sphi 0, %s32
    %s33 = sphi 0, %s30
    %s34 = sphi 0, %s33
    %s50 = sphi 0, %s34
    %s56 = sphi 0, %s58
    %s59 = sphi 0, %s56
    %s60 = sphi 0, %s59
    %s76 = sphi 0, %s60
    %s84 = sphi 0, %s86
    %s87 = sphi 0, %s84
    %s88 = sphi 0, %s87
    %s104 = sphi 0, %s88
  $region4: #{tpu_custom_call.1} parent=0 // loop_header_branch
    %11 = sbr.rel (%p9) target = $region8
  $region5: #{tpu_custom_call.1} parent=0 // loop_body
    %s13 = ssub.s32 %s8, 1
    %s14 = ssub.s32 %s8, 2
    %s21 = sadd.s32 1, %s16
    %p22 = scmp.ge.s32.totalorder %s21, 2
    %s23 = scalar_select %p22, 0, %s21
    %s24 = sadd.s32 1, %s15
    %s25 = scalar_select %p22, %s24, %s15
    %p26 = scmp.ge.s32.totalorder %s25, 3
    %s27 = scalar_select %p26, 0, %s25
    %s28 = ssub.s32 %s16, %s23
    %p29 = scmp.eq.s32.totalorder %s28, 0
    %s31 = sadd.s32 %s30, 1
    %s32 = scalar_select %p29, %s30, %s31
    %p35 = pneg %p29
    %p36 = scmp.eq.s32.totalorder %s8, 5
    %p37 = por %p35, %p36
    %p38 = scmp.ne.s32.totalorder %s30, %s33
    %p39 = scmp.eq.s32.totalorder %s8, 0
    %p40 = por %p38, %p39
    %p41 = scmp.ne.s32.totalorder %s30, %s33
    %p42 = scmp.eq.s32.totalorder %s13, 5
    %p43 = por %p41, %p42
    %p44 = scmp.ne.s32.totalorder %s33, %s34
    %p45 = scmp.eq.s32.totalorder %s13, 0
    %p46 = por %p44, %p45
    %p47 = scmp.ne.s32.totalorder %s33, %s34
    %p48 = scmp.eq.s32.totalorder %s14, 5
    %p49 = por %p47, %p48
    %p51 = scmp.ne.s32.totalorder %s34, %s50
    %p52 = scmp.eq.s32.totalorder %s14, 0
    %p53 = por %p51, %p52
    %s54 = ssub.s32 %s15, %s27
    %p55 = scmp.eq.s32.totalorder %s54, 0
    %s57 = sadd.s32 %s56, 1
    %s58 = scalar_select %p55, %s56, %s57
    %p61 = pneg %p55
    %p62 = scmp.eq.s32.totalorder %s8, 5
    %p63 = por %p61, %p62
    %p64 = scmp.ne.s32.totalorder %s56, %s59
    %p65 = scmp.eq.s32.totalorder %s8, 0
    %p66 = por %p64, %p65
    %p67 = scmp.ne.s32.totalorder %s56, %s59
    %p68 = scmp.eq.s32.totalorder %s13, 5
    %p69 = por %p67, %p68
    %p70 = scmp.ne.s32.totalorder %s59, %s60
    %p71 = scmp.eq.s32.totalorder %s13, 0
    %p72 = por %p70, %p71
    %p73 = scmp.ne.s32.totalorder %s59, %s60
    %p74 = scmp.eq.s32.totalorder %s14, 5
    %p75 = por %p73, %p74
    %p77 = scmp.ne.s32.totalorder %s60, %s76
    %p78 = scmp.eq.s32.totalorder %s14, 0
    %p79 = por %p77, %p78
    %s80 = ssub.s32 %s15, %s27
    %s81 = ssub.s32 %s16, %s23
    %s82 = sor.u32 %s80, %s81
    %p83 = scmp.eq.s32.totalorder %s82, 0
    %s85 = sadd.s32 %s84, 1
    %s86 = scalar_select %p83, %s84, %s85
    %p89 = pneg %p83
    %p90 = scmp.eq.s32.totalorder %s8, 5
    %p91 = por %p89, %p90
    %p92 = scmp.ne.s32.totalorder %s84, %s87
    %p93 = scmp.eq.s32.totalorder %s8, 0
    %p94 = por %p92, %p93
    %p95 = scmp.ne.s32.totalorder %s84, %s87
    %p96 = scmp.eq.s32.totalorder %s13, 5
    %p97 = por %p95, %p96
    %p98 = scmp.ne.s32.totalorder %s87, %s88
    %p99 = scmp.eq.s32.totalorder %s13, 0
    %p100 = por %p98, %p99
    %p101 = scmp.ne.s32.totalorder %s87, %s88
    %p102 = scmp.eq.s32.totalorder %s14, 5
    %p103 = por %p101, %p102
    %p105 = scmp.ne.s32.totalorder %s88, %s104
    %p106 = scmp.eq.s32.totalorder %s14, 0
    %p107 = por %p105, %p106
    %p108 = scmp.le.s32.totalorder 1, %s8
    %p109 = scmp.lt.s32.totalorder %s8, 7
    %p110 = pnand %p108, %p109
    %p111 = pneg %p110
    // Predicated region
    $region9: #{tpu_custom_call.1} parent=5 // pred_check
      _
    $region10: #{tpu_custom_call.1} parent=5 // pred_check_branch
      %113 = sbr.rel (%p110) target = $region12
    $region11: #{tpu_custom_call.1} parent=5 // pred_region
      %s114 = ssub.s32 %s8, 1
    $region12: #{tpu_custom_call.1} parent=5 // pred_fallthru
      _
    %p115 = scmp.lt.s32.totalorder %s8, 6
    // Predicated region
    $region13: #{tpu_custom_call.1} parent=5 // pred_check
      %p116 = pneg %p115
    $region14: #{tpu_custom_call.1} parent=5 // pred_check_branch
      %118 = sbr.rel (%p116) target = $region16
    $region15: #{tpu_custom_call.1} parent=5 // pred_region
      // Predicated region
      $region17: #{tpu_custom_call.1} parent=15 // pred_check
        %p119 = pneg %p40
      $region18: #{tpu_custom_call.1} parent=15 // pred_check_branch
        %121 = sbr.rel (%p119) target = $region20
      $region19: #{tpu_custom_call.1} parent=15 // pred_region
        %s122 = smul.u32 8, %s16
        %p123 = scmp.lt.s32.totalorder %s122, 15
        %s124 = scalar_select %p123, %s122, 15
        %s125 = smul.addr %s124, 8
        %s126 = scalar_lea.vmem %s0, %s125
        %s127 = smul.u32 8, %s16
      $region20: #{tpu_custom_call.1} parent=15 // pred_fallthru
        _
      // Predicated region
      $region21: #{tpu_custom_call.1} parent=15 // pred_check
        %p128 = pneg %p66
      $region22: #{tpu_custom_call.1} parent=15 // pred_check_branch
        %130 = sbr.rel (%p128) target = $region24
      $region23: #{tpu_custom_call.1} parent=15 // pred_region
        %p131 = scmp.lt.s32.totalorder %s15, 2
        %s132 = scalar_select %p131, %s15, 2
        %s133 = smul.addr %s132, 4
        %s134 = smul.addr %s133, 8
        %s135 = scalar_lea.vmem %s1, %s134
      $region24: #{tpu_custom_call.1} parent=15 // pred_fallthru
        _
    $region16: #{tpu_custom_call.1} parent=5 // pred_fallthru
      _
    %p136 = scmp.le.s32.totalorder 1, %s8
    %p137 = scmp.lt.s32.totalorder %s8, 7
    %p138 = pnand %p136, %p137
    %p139 = pneg %p138
    // Predicated region
    $region25: #{tpu_custom_call.1} parent=5 // pred_check
      _
    $region26: #{tpu_custom_call.1} parent=5 // pred_check_branch
      %141 = sbr.rel (%p138) target = $region28
    $region27: #{tpu_custom_call.1} parent=5 // pred_region
      %s142 = ssub.s32 %s8, 1
      %s143 = smul.u32 8, %s18
      %p144 = scmp.lt.s32.totalorder %s143, 15
      %s145 = scalar_select %p144, %s143, 15
      %s146 = smul.addr %s145, 8
      %s147 = scalar_lea.vmem %s0, %s146
      %p148 = pneg %p46
      %p149 = pneg %p43
      %p150 = scmp.lt.s32.totalorder %s17, 2
      %s151 = scalar_select %p150, %s17, 2
      %s152 = smul.addr %s151, 4
      %s153 = smul.addr %s152, 8
      %s154 = scalar_lea.vmem %s1, %s153
      %p155 = pneg %p72
      %p156 = pneg %p69
      %p157 = pneg %p100
      %p158 = pneg %p97
      %s159 = smul.u32 8, %s18
      %p160 = scmp.lt.s32.totalorder %s17, 2
      %s161 = scalar_select %p160, %s17, 2
      %p162 = scmp.lt.s32.totalorder %s159, 15
      %s163 = scalar_select %p162, %s159, 15
      %s164 = smul.addr %s161, 16
      %s165 = sadd.s32 %s163, %s164
      %s166 = smul.addr %s165, 8
      %s167 = scalar_lea.vmem %s2, %s166
      %s168 = smul.u32 8, %s18
      %p169 = scmp.lt.s32.totalorder %s168, 15
      %s170 = scalar_select %p169, %s168, 15
      %s171 = smul.addr %s170, 8
      %s172 = scalar_lea.vmem %s0, %s171
      %s173 = smul.u32 8, %s18
      %p174 = scmp.lt.s32.totalorder %s17, 2
      %s175 = scalar_select %p174, %s17, 2
      %s176 = smul.addr %s175, 4
      %s177 = smul.addr %s176, 8
      %s178 = scalar_lea.vmem %s1, %s177
      %s179 = smul.u32 8, %s18
      %p180 = scmp.lt.s32.totalorder %s17, 2
      %s181 = scalar_select %p180, %s17, 2
      %p182 = scmp.lt.s32.totalorder %s179, 15
      %s183 = scalar_select %p182, %s179, 15
      %s184 = smul.addr %s181, 16
      %s185 = sadd.s32 %s183, %s184
      %s186 = smul.addr %s185, 8
      %s187 = scalar_lea.vmem %s2, %s186
      %s188 = smul.u32 8, %s18
      %v189 = vld [vmem:[%s172] sm:$0xff]
      %v190 = vld [vmem:[%s172 + $0x8] sm:$0xff]
      %v191 = vld [vmem:[%s172 + $0x10] sm:$0xff]
      %v192 = vld [vmem:[%s172 + $0x18] sm:$0xff]
      %v193 = vld [vmem:[%s172 + $0x20] sm:$0xff]
      %v194 = vld [vmem:[%s172 + $0x28] sm:$0xff]
      %v195 = vld [vmem:[%s172 + $0x30] sm:$0xff]
      %v196 = vld [vmem:[%s172 + $0x38] sm:$0xff]
      %v197 = vld [vmem:[%s178] sm:$0xff]
      %v198 = vld [vmem:[%s178 + $0x8] sm:$0xff]
      %v199 = vld [vmem:[%s178 + $0x10] sm:$0xff]
      %v200 = vld [vmem:[%s178 + $0x18] sm:$0xff]
      %vm201 = vcmask 261120
      %v203 = vsel %vm201, %v189, 0
      %v206 = vsel %vm201, %v190, 0
      %v209 = vsel %vm201, %v191, 0
      %v212 = vsel %vm201, %v192, 0
      %v215 = vsel %vm201, %v193, 0
      %v218 = vsel %vm201, %v194, 0
      %v221 = vsel %vm201, %v195, 0
      %v224 = vsel %vm201, %v196, 0
      %226 = vmatprep.subr.mxu0 0.0
      %227 = vmatpush1.msra.mxu0 0.0
      %228 = vmatprep.subr.mxu0 0.0
      %229 = vmatpush1.msra.mxu0 0.0
      %230 = vmatprep.subr.mxu0 0.0
      %231 = vmatpush1.msra.mxu0 0.0
      %232 = vmatprep.subr.mxu0 0.0
      %233 = vmatpush1.msra.mxu0 0.0
      %234 = vmatprep.subr.mxu0 0.0
      %235 = vmatpush1.msra.mxu0 0.0
      %236 = vmatprep.subr.mxu0 0.0
      %237 = vmatpush1.msra.mxu0 0.0
      %238 = vmatprep.subr.mxu0 0.0
      %239 = vmatpush1.msra.mxu0 0.0
      %240 = vmatprep.subr.mxu0 0.0
      %241 = vmatpush1.msra.mxu0 0.0
      %242 = vmatprep.subr.mxu0 0.0
      %243 = vmatpush1.msra.mxu0 0.0
      %244 = vmatprep.subr.mxu0 0.0
      %245 = vmatpush1.msra.mxu0 0.0
      %246 = vmatprep.subr.mxu0 0.0
      %247 = vmatpush1.msra.mxu0 0.0
      %248 = vmatprep.subr.mxu0 0.0
      %249 = vmatpush1.msra.mxu0 0.0
      %250 = vmatprep.subr.mxu0 0.0
      %251 = vmatpush1.msra.mxu0 %v200
      %252 = vmatprep.subr.mxu0 0.0
      %253 = vmatpush1.msra.mxu0 %v199
      %254 = vmatprep.subr.mxu0 0.0
      %255 = vmatpush1.msra.mxu0 %v198
      %256 = vmatprep.subr.mxu0 0.0
      %257 = vmatpush1.msra.mxu0 %v197
      %258 = vmatprep.subr.mxu0 0.0
      %259 = vmatpush2.msra.mxu0 0.0
      %260 = vmatprep.subr.mxu0 0.0
      %261 = vmatpush2.msra.mxu0 0.0
      %262 = vmatprep.subr.mxu0 0.0
      %263 = vmatpush2.msra.mxu0 0.0
      %264 = vmatprep.subr.mxu0 0.0
      %265 = vmatpush2.msra.mxu0 0.0
      %266 = vmatprep.subr.mxu0 0.0
      %267 = vmatpush2.msra.mxu0 0.0
      %268 = vmatprep.subr.mxu0 0.0
      %269 = vmatpush2.msra.mxu0 0.0
      %270 = vmatprep.subr.mxu0 0.0
      %271 = vmatpush2.msra.mxu0 0.0
      %272 = vmatprep.subr.mxu0 0.0
      %273 = vmatpush2.msra.mxu0 0.0
      %274 = vmatprep.subr.mxu0 0.0
      %275 = vmatpush2.msra.mxu0 0.0
      %276 = vmatprep.subr.mxu0 0.0
      %277 = vmatpush2.msra.mxu0 0.0
      %278 = vmatprep.subr.mxu0 0.0
      %279 = vmatpush2.msra.mxu0 0.0
      %280 = vmatprep.subr.mxu0 0.0
      %281 = vmatpush2.msra.mxu0 0.0
      %282 = vmatprep.subr.mxu0 0.0
      %283 = vmatpush2.msra.mxu0 0.0
      %284 = vmatprep.subr.mxu0 0.0
      %285 = vmatpush2.msra.mxu0 0.0
      %286 = vmatprep.subr.mxu0 0.0
      %287 = vmatpush2.msra.mxu0 0.0
      %288 = vmatprep.subr.mxu0 0.0
      %289 = vmatpush2.msra.mxu0 0.0
      %290 = vmatprep.mubr.f32.mxu0 0.0
      %291 = vmatmul.mubr.f32.gmra.mxu0 %v203
      %v292 = vpop.f32.mrf.mxu0
      %v293 = vadd.f32 0.0, %v292
      %v294 = vpop.f32.mrf.mxu0
      %295 = vmatprep.mubr.f32.mxu0 0.0
      %296 = vmatmul.mubr.f32.gmra.mxu0 %v206
      %v297 = vpop.f32.mrf.mxu0
      %v298 = vadd.f32 0.0, %v297
      %v299 = vpop.f32.mrf.mxu0
      %300 = vmatprep.mubr.f32.mxu0 0.0
      %301 = vmatmul.mubr.f32.gmra.mxu0 %v209
      %v302 = vpop.f32.mrf.mxu0
      %v303 = vadd.f32 0.0, %v302
      %v304 = vpop.f32.mrf.mxu0
      %305 = vmatprep.mubr.f32.mxu0 0.0
      %306 = vmatmul.mubr.f32.gmra.mxu0 %v212
      %v307 = vpop.f32.mrf.mxu0
      %v308 = vadd.f32 0.0, %v307
      %v309 = vpop.f32.mrf.mxu0
      %310 = vmatprep.mubr.f32.mxu0 0.0
      %311 = vmatmul.mubr.f32.gmra.mxu0 %v215
      %v312 = vpop.f32.mrf.mxu0
      %v313 = vadd.f32 0.0, %v312
      %v314 = vpop.f32.mrf.mxu0
      %315 = vmatprep.mubr.f32.mxu0 0.0
      %316 = vmatmul.mubr.f32.gmra.mxu0 %v218
      %v317 = vpop.f32.mrf.mxu0
      %v318 = vadd.f32 0.0, %v317
      %v319 = vpop.f32.mrf.mxu0
      %320 = vmatprep.mubr.f32.mxu0 0.0
      %321 = vmatmul.mubr.f32.gmra.mxu0 %v221
      %v322 = vpop.f32.mrf.mxu0
      %v323 = vadd.f32 0.0, %v322
      %v324 = vpop.f32.mrf.mxu0
      %325 = vmatprep.mubr.f32.mxu0 0.0
      %326 = vmatmul.mubr.f32.gmra.mxu0 %v224
      %v327 = vpop.f32.mrf.mxu0
      %v328 = vadd.f32 0.0, %v327
      %v329 = vpop.f32.mrf.mxu0
      %330 = vdwg.mxu0
      %331 = vst.msk [vmem:[%s187] sm:$0xff] %vm201, %v293
      %332 = vst.msk [vmem:[%s187 + $0x8] sm:$0xff] %vm201, %v298
      %333 = vst.msk [vmem:[%s187 + $0x10] sm:$0xff] %vm201, %v303
      %334 = vst.msk [vmem:[%s187 + $0x18] sm:$0xff] %vm201, %v308
      %335 = vst.msk [vmem:[%s187 + $0x20] sm:$0xff] %vm201, %v313
      %336 = vst.msk [vmem:[%s187 + $0x28] sm:$0xff] %vm201, %v318
      %337 = vst.msk [vmem:[%s187 + $0x30] sm:$0xff] %vm201, %v323
      %338 = vst.msk [vmem:[%s187 + $0x38] sm:$0xff] %vm201, %v328
      %s339 = smul.u32 8, %s18
      %p340 = scmp.lt.s32.totalorder %s17, 2
      %s341 = scalar_select %p340, %s17, 2
      %p342 = scmp.lt.s32.totalorder %s339, 15
      %s343 = scalar_select %p342, %s339, 15
      %s344 = smul.addr %s341, 16
      %s345 = sadd.s32 %s343, %s344
      %s346 = smul.addr %s345, 8
      %s347 = scalar_lea.vmem %s2, %s346
      // Predicated region
      $region29: #{tpu_custom_call.1} parent=27 // pred_check
        %p348 = pneg %p97
      $region30: #{tpu_custom_call.1} parent=27 // pred_check_branch
        %350 = sbr.rel (%p348) target = $region32
      $region31: #{tpu_custom_call.1} parent=27 // pred_region
        %s351 = smul.u32 8, %s18
      $region32: #{tpu_custom_call.1} parent=27 // pred_fallthru
        _
    $region28: #{tpu_custom_call.1} parent=5 // pred_fallthru
      _
    %p352 = scmp.le.s32.totalorder 2, %s8
    // Predicated region
    $region33: #{tpu_custom_call.1} parent=5 // pred_check
      %p353 = pneg %p352
    $region34: #{tpu_custom_call.1} parent=5 // pred_check_branch
      %355 = sbr.rel (%p353) target = $region36
    $region35: #{tpu_custom_call.1} parent=5 // pred_region
      %s356 = ssub.s32 %s8, 2
      // Predicated region
      $region37: #{tpu_custom_call.1} parent=35 // pred_check
        %p357 = pneg %p103
      $region38: #{tpu_custom_call.1} parent=35 // pred_check_branch
        %359 = sbr.rel (%p357) target = $region40
      $region39: #{tpu_custom_call.1} parent=35 // pred_region
        %s360 = smul.u32 8, %s20
        %p361 = scmp.lt.s32.totalorder %s19, 2
        %s362 = scalar_select %p361, %s19, 2
        %p363 = scmp.lt.s32.totalorder %s360, 15
        %s364 = scalar_select %p363, %s360, 15
        %s365 = smul.addr %s362, 16
        %s366 = sadd.s32 %s364, %s365
        %s367 = smul.addr %s366, 8
        %s368 = scalar_lea.vmem %s2, %s367
      $region40: #{tpu_custom_call.1} parent=35 // pred_fallthru
        _
    $region36: #{tpu_custom_call.1} parent=5 // pred_fallthru
      _
  $region6: #{tpu_custom_call.1} parent=0 // loop_footer
    %s12 = sadd.s32 1, %s8
  $region7: #{tpu_custom_call.1} parent=0 // loop_footer_branch
    %7 = sbr.rel target = $region3
  $region8: #{tpu_custom_call.1} parent=0 // loop_exit
    _

</llo_original>
